<compile_context>
chip_gen: v5e
topology: v5e:2x2
jax: 0.10.0
libtpu: 0.0.40
codegen_flags: <defaults>
</compile_context>

<pallas_src>
import math

import jax
import jax.numpy as jnp
from jax import lax
from jax.experimental import pallas as pl
from jax.experimental.pallas import tpu as pltpu

# ---- model configuration (args.* of the PyTorch module) -------------------
B = 2                  # batch_size
N = 8                  # num_history
D = 32                 # word_embedding_dim
H = 4                  # num_attention_heads
DK = D // H            # per-head dim
DQ = 16                # query_vector_dim
OUT_SUB = 8            # sublane-padded output rows (full 8-sublane tile)
OUT_LANES = 128        # lane-padded output cols  (full 128-lane tile)


def user_encoder_kernel(x_ref, wqkv_ref, wa_ref, baqv_ref, out_ref):
    f32 = jnp.float32

    # ---- fused QKV projection: one MXU matmul for the whole batch ---------
    x2 = x_ref[...].reshape(B * N, D)                              # (B*N, D)
    qkv = jnp.dot(x2, wqkv_ref[...], preferred_element_type=f32)   # (B*N, 3D)
    qkv = qkv.reshape(B, N, 3 * D)
    q = qkv[:, :, 0:D]          # 1/sqrt(DK) already folded into Wq columns
    k = qkv[:, :, D:2 * D]
    v = qkv[:, :, 2 * D:3 * D]

    # one-hot head-membership matrices from 2-D iotas (no extra operands,
    # no lane-splitting reshapes in the kernel)
    d_col = lax.broadcasted_iota(jnp.int32, (D, H), 0)
    h_col = lax.broadcasted_iota(jnp.int32, (D, H), 1)
    headsum = jnp.where((d_col >= h_col * DK) & (d_col < (h_col + 1) * DK),
                        1.0, 0.0).astype(f32)                      # (D, H)
    h_row = lax.broadcasted_iota(jnp.int32, (H, D), 0)
    d_row = lax.broadcasted_iota(jnp.int32, (H, D), 1)
    expand = jnp.where((d_row >= h_row * DK) & (d_row < (h_row + 1) * DK),
                       1.0, 0.0).astype(f32)                       # (H, D)

    # ---- multi-head self attention, all heads at once ----------------------
    # prod[b, n, m, :] = q[b, n, :] * k[b, m, :]   (VPU broadcast multiply)
    prod = q[:, :, None, :] * k[:, None, :, :]                     # (B,N,N,D)
    # per-head contraction over DK lanes via one small one-hot matmul
    scores = jnp.dot(prod.reshape(B * N * N, D), headsum,
                     preferred_element_type=f32).reshape(B, N, N, H)
    # NRMS ScaledDotProductAttention: exp / (sum over keys + 1e-8), no max-sub
    # (faithful to the PyTorch formulation; can overflow for huge activations)
    e = jnp.exp(scores)
    inv = pl.reciprocal(jnp.sum(e, axis=2, keepdims=True) + 1e-8, approx=True)
    attn = e * inv                                                 # (B,N,M,H)
    # broadcast each head's weight across its DK lanes, weighted-sum over keys
    attn_e = jnp.dot(attn.reshape(B * N * N, H), expand,
                     preferred_element_type=f32).reshape(B, N, N, D)
    context = jnp.sum(attn_e * v[:, None, :, :], axis=2)           # (B,N,D)

    # ---- additive attention pooling ----------------------------------------
    ba = baqv_ref[0:1, :]                                          # (1, DQ)
    qv = baqv_ref[1:2, :]                                          # (1, DQ)
    ctx2 = context.reshape(B * N, D)
    t = jnp.tanh(jnp.dot(ctx2, wa_ref[...], preferred_element_type=f32) + ba)
    s = jnp.sum(t * qv, axis=-1, keepdims=True).reshape(B, N, 1)
    s = s - jnp.max(s, axis=1, keepdims=True)                      # softmax(N)
    e2 = jnp.exp(s)
    w = e2 / jnp.sum(e2, axis=1, keepdims=True)                    # exact divide
    out = jnp.sum(w * context, axis=1)                             # (B, D)

    # full (8, 128) lane- and sublane-dense store; wrapper slices [:B, :D]
    out = jnp.concatenate([out, jnp.zeros((B, OUT_LANES - D), f32)], axis=-1)
    out = jnp.concatenate(
        [out, jnp.zeros((OUT_SUB - B, OUT_LANES), f32)], axis=0)
    out_ref[...] = out


def user_encoder(x, wqkv, wa, baqv):
    """x: (B,N,D) f32; wqkv: (D,3D) fused weight (1/sqrt(DK) folded into Q);
    wa: (D,DQ); baqv: (2,DQ) = [ba; query_vector]."""
    out_padded = pl.pallas_call(
        user_encoder_kernel,
        out_shape=jax.ShapeDtypeStruct((OUT_SUB, OUT_LANES), jnp.float32),
        grid_spec=pltpu.PrefetchScalarGridSpec(
            num_scalar_prefetch=0,
            grid=(1,),                                   # whole batch, one step
            in_specs=[
                pl.BlockSpec((B, N, D), lambda i: (0, 0, 0)),    # user_vector
                pl.BlockSpec((D, 3 * D), lambda i: (0, 0)),      # fused Wqkv
                pl.BlockSpec((D, DQ), lambda i: (0, 0)),         # Wa
                pl.BlockSpec((2, DQ), lambda i: (0, 0)),         # [ba; qv]
            ],
            out_specs=pl.BlockSpec((OUT_SUB, OUT_LANES), lambda i: (0, 0)),
        ),
        compiler_params=pltpu.CompilerParams(
            dimension_semantics=("arbitrary",)),
    )(x, wqkv, wa, baqv)
    return out_padded[:B, :D]


def reference(x, wq, wk, wv, wa, ba, qv):
    """Pure-JAX reference mirroring the PyTorch forward (unfused weights)."""
    q = x @ wq
    k = x @ wk
    v = x @ wv

    def split(a):
        return a.reshape(B, N, H, DK).transpose(0, 2, 1, 3)

    qh, kh, vh = split(q), split(k), split(v)
    scores = jnp.einsum("bhnd,bhmd->bhnm", qh, kh) / math.sqrt(DK)
    e = jnp.exp(scores)
    attn = e / (jnp.sum(e, axis=-1, keepdims=True) + 1e-8)
    ctx = jnp.einsum("bhnm,bhmd->bhnd", attn, vh)
    ctx = ctx.transpose(0, 2, 1, 3).reshape(B, N, D)
    t = jnp.tanh(ctx @ wa + ba)                      # (B, N, DQ)
    s = t @ qv[0]                                    # (B, N)
    w = jax.nn.softmax(s, axis=1)
    return jnp.einsum("bn,bnd->bd", w, ctx)


if __name__ == "__main__":
    key = jax.random.PRNGKey(0)
    kx, k1, k2, k3, k4, k5, k6 = jax.random.split(key, 7)

    x = jax.random.normal(kx, (B, N, D), dtype=jnp.float32)
    # deterministic parameter init (synthetic; no checkpoint load)
    wq = jax.random.uniform(k1, (D, D), jnp.float32, -0.1, 0.1)
    wk = jax.random.uniform(k2, (D, D), jnp.float32, -0.1, 0.1)
    wv = jax.random.uniform(k3, (D, D), jnp.float32, -0.1, 0.1)
    wa = jax.random.uniform(k4, (D, DQ), jnp.float32, -0.1, 0.1)
    ba = jax.random.uniform(k5, (1, DQ), jnp.float32, -0.1, 0.1)
    qv = jax.random.uniform(k6, (1, DQ), jnp.float32, -0.1, 0.1)

    # one-time host-side parameter prep:
    #   fold 1/sqrt(DK) into Wq, fuse QKV, pack ba + query vector
    wqkv = jnp.concatenate([wq * (1.0 / math.sqrt(DK)), wk, wv], axis=1)
    baqv = jnp.concatenate([ba, qv], axis=0)

    out = jax.block_until_ready(user_encoder(x, wqkv, wa, baqv))

    ref = reference(x, wq, wk, wv, wa, ba, qv)
    assert out.shape == (B, D)
    max_err = jnp.max(jnp.abs(out - ref))
    # tolerance accounts for the approx-reciprocal MHSA softmax divide
    assert jnp.allclose(out, ref, atol=2e-3, rtol=2e-3), f"max err {max_err}"

    print("KERNEL_OK")
</pallas_src>

<mosaic_0001>
module attributes {stable_mosaic.version = 11 : i64} {
  func.func @user_encoder_kernel(%arg0: i32, %arg1: memref<2x8x32xf32, #tpu.memory_space<vmem>>, %arg2: memref<32x96xf32, #tpu.memory_space<vmem>>, %arg3: memref<32x16xf32, #tpu.memory_space<vmem>>, %arg4: memref<2x16xf32, #tpu.memory_space<vmem>>, %arg5: memref<8x128xf32, #tpu.memory_space<vmem>>) attributes {dimension_semantics = [#tpu.dimension_semantics<arbitrary>], iteration_bounds = array<i64: 1>, scalar_prefetch = 0 : i64, scratch_operands = 0 : i64, tpu.core_type = #tpu.core_type<tc>, window_params = [{pipeline_mode = #tpu.pipeline_mode<synchronous>, transform_indices = @transform_0, window_bounds = array<i64: 2, 8, 32>}, {pipeline_mode = #tpu.pipeline_mode<synchronous>, transform_indices = @transform_1, window_bounds = array<i64: 32, 96>}, {pipeline_mode = #tpu.pipeline_mode<synchronous>, transform_indices = @transform_2, window_bounds = array<i64: 32, 16>}, {pipeline_mode = #tpu.pipeline_mode<synchronous>, transform_indices = @transform_3, window_bounds = array<i64: 2, 16>}, {pipeline_mode = #tpu.pipeline_mode<synchronous>, transform_indices = @transform_4, window_bounds = array<i64: 8, 128>}]} {
    %c0 = arith.constant 0 : index
    %c0_0 = arith.constant 0 : index
    %c0_1 = arith.constant 0 : index
    %0 = vector.load %arg1[%c0, %c0_0, %c0_1] : memref<2x8x32xf32, #tpu.memory_space<vmem>>, vector<2x8x32xf32>
    %1 = vector.shape_cast %0 : vector<2x8x32xf32> to vector<16x32xf32>
    %c0_2 = arith.constant 0 : index
    %c0_3 = arith.constant 0 : index
    %2 = vector.load %arg2[%c0_2, %c0_3] : memref<32x96xf32, #tpu.memory_space<vmem>>, vector<32x96xf32>
    %cst = arith.constant dense<0.000000e+00> : vector<16x96xf32>
    %3 = tpu.matmul %1, %2, %cst {dimension_numbers = #tpu.dot_dimension_numbers<[1], [0], [0], [1], [0, 0, 1, 1], [], []>} : vector<16x32xf32>, vector<32x96xf32>, vector<16x96xf32> -> vector<16x96xf32>
    %4 = vector.shape_cast %3 : vector<16x96xf32> to vector<2x8x96xf32>
    %5 = vector.extract_strided_slice %4 {offsets = [0, 0, 0], sizes = [2, 8, 32], strides = [1, 1, 1]} : vector<2x8x96xf32> to vector<2x8x32xf32>
    %6 = vector.extract_strided_slice %4 {offsets = [0, 0, 32], sizes = [2, 8, 32], strides = [1, 1, 1]} : vector<2x8x96xf32> to vector<2x8x32xf32>
    %7 = vector.extract_strided_slice %4 {offsets = [0, 0, 64], sizes = [2, 8, 32], strides = [1, 1, 1]} : vector<2x8x96xf32> to vector<2x8x32xf32>
    %8 = tpu.iota {dimensions = array<i32: 0>} : vector<32x4xi32>
    %9 = tpu.iota {dimensions = array<i32: 1>} : vector<32x4xi32>
    %c8_i32 = arith.constant 8 : i32
    %10 = vector.broadcast %c8_i32 : i32 to vector<32x4xi32>
    %11 = arith.muli %9, %10 : vector<32x4xi32>
    %12 = arith.cmpi sge, %8, %11 : vector<32x4xi32>
    %c1_i32 = arith.constant 1 : i32
    %13 = vector.broadcast %c1_i32 : i32 to vector<32x4xi32>
    %14 = arith.addi %9, %13 : vector<32x4xi32>
    %c8_i32_4 = arith.constant 8 : i32
    %15 = vector.broadcast %c8_i32_4 : i32 to vector<32x4xi32>
    %16 = arith.muli %14, %15 : vector<32x4xi32>
    %17 = arith.cmpi slt, %8, %16 : vector<32x4xi32>
    %18 = arith.andi %12, %17 : vector<32x4xi1>
    %cst_5 = arith.constant 1.000000e+00 : f32
    %cst_6 = arith.constant 0.000000e+00 : f32
    %19 = vector.broadcast %cst_5 : f32 to vector<32x4xf32>
    %20 = vector.broadcast %cst_6 : f32 to vector<32x4xf32>
    %21 = arith.select %18, %19, %20 : vector<32x4xi1>, vector<32x4xf32>
    %22 = tpu.iota {dimensions = array<i32: 0>} : vector<4x32xi32>
    %23 = tpu.iota {dimensions = array<i32: 1>} : vector<4x32xi32>
    %c8_i32_7 = arith.constant 8 : i32
    %24 = vector.broadcast %c8_i32_7 : i32 to vector<4x32xi32>
    %25 = arith.muli %22, %24 : vector<4x32xi32>
    %26 = arith.cmpi sge, %23, %25 : vector<4x32xi32>
    %c1_i32_8 = arith.constant 1 : i32
    %27 = vector.broadcast %c1_i32_8 : i32 to vector<4x32xi32>
    %28 = arith.addi %22, %27 : vector<4x32xi32>
    %c8_i32_9 = arith.constant 8 : i32
    %29 = vector.broadcast %c8_i32_9 : i32 to vector<4x32xi32>
    %30 = arith.muli %28, %29 : vector<4x32xi32>
    %31 = arith.cmpi slt, %23, %30 : vector<4x32xi32>
    %32 = arith.andi %26, %31 : vector<4x32xi1>
    %cst_10 = arith.constant 1.000000e+00 : f32
    %cst_11 = arith.constant 0.000000e+00 : f32
    %33 = vector.broadcast %cst_10 : f32 to vector<4x32xf32>
    %34 = vector.broadcast %cst_11 : f32 to vector<4x32xf32>
    %35 = arith.select %32, %33, %34 : vector<4x32xi1>, vector<4x32xf32>
    %36 = vector.shape_cast %5 : vector<2x8x32xf32> to vector<2x8x1x32xf32>
    %37 = vector.shape_cast %6 : vector<2x8x32xf32> to vector<2x1x8x32xf32>
    %38 = vector.broadcast %36 : vector<2x8x1x32xf32> to vector<2x8x8x32xf32>
    %39 = vector.broadcast %37 : vector<2x1x8x32xf32> to vector<2x8x8x32xf32>
    %40 = arith.mulf %38, %39 : vector<2x8x8x32xf32>
    %41 = vector.shape_cast %40 : vector<2x8x8x32xf32> to vector<128x32xf32>
    %cst_12 = arith.constant dense<0.000000e+00> : vector<128x4xf32>
    %42 = tpu.matmul %41, %21, %cst_12 {dimension_numbers = #tpu.dot_dimension_numbers<[1], [0], [0], [1], [0, 0, 1, 1], [], []>} : vector<128x32xf32>, vector<32x4xf32>, vector<128x4xf32> -> vector<128x4xf32>
    %43 = vector.shape_cast %42 : vector<128x4xf32> to vector<2x8x8x4xf32>
    %44 = math.exp %43 : vector<2x8x8x4xf32>
    %cst_13 = arith.constant dense<0.000000e+00> : vector<2x8x4xf32>
    %45 = vector.multi_reduction <add>, %44, %cst_13 [2] : vector<2x8x8x4xf32> to vector<2x8x4xf32>
    %46 = vector.shape_cast %45 : vector<2x8x4xf32> to vector<2x8x1x4xf32>
    %cst_14 = arith.constant 9.99999993E-9 : f32
    %47 = vector.broadcast %cst_14 : f32 to vector<2x8x1x4xf32>
    %48 = arith.addf %46, %47 : vector<2x8x1x4xf32>
    %49 = tpu.reciprocal %48 {approx = true} : vector<2x8x1x4xf32> -> vector<2x8x1x4xf32>
    %50 = vector.broadcast %49 : vector<2x8x1x4xf32> to vector<2x8x8x4xf32>
    %51 = arith.mulf %44, %50 : vector<2x8x8x4xf32>
    %52 = vector.shape_cast %51 : vector<2x8x8x4xf32> to vector<128x4xf32>
    %cst_15 = arith.constant dense<0.000000e+00> : vector<128x32xf32>
    %53 = tpu.matmul %52, %35, %cst_15 {dimension_numbers = #tpu.dot_dimension_numbers<[1], [0], [0], [1], [0, 0, 1, 1], [], []>} : vector<128x4xf32>, vector<4x32xf32>, vector<128x32xf32> -> vector<128x32xf32>
    %54 = vector.shape_cast %53 : vector<128x32xf32> to vector<2x8x8x32xf32>
    %55 = vector.shape_cast %7 : vector<2x8x32xf32> to vector<2x1x8x32xf32>
    %56 = vector.broadcast %55 : vector<2x1x8x32xf32> to vector<2x8x8x32xf32>
    %57 = arith.mulf %54, %56 : vector<2x8x8x32xf32>
    %cst_16 = arith.constant dense<0.000000e+00> : vector<2x8x32xf32>
    %58 = vector.multi_reduction <add>, %57, %cst_16 [2] : vector<2x8x8x32xf32> to vector<2x8x32xf32>
    %c0_17 = arith.constant 0 : index
    %c0_18 = arith.constant 0 : index
    %59 = vector.load %arg4[%c0_17, %c0_18] : memref<2x16xf32, #tpu.memory_space<vmem>>, vector<1x16xf32>
    %c1 = arith.constant 1 : index
    %c0_19 = arith.constant 0 : index
    %60 = vector.load %arg4[%c1, %c0_19] : memref<2x16xf32, #tpu.memory_space<vmem>>, vector<1x16xf32>
    %61 = vector.shape_cast %58 : vector<2x8x32xf32> to vector<16x32xf32>
    %c0_20 = arith.constant 0 : index
    %c0_21 = arith.constant 0 : index
    %62 = vector.load %arg3[%c0_20, %c0_21] : memref<32x16xf32, #tpu.memory_space<vmem>>, vector<32x16xf32>
    %cst_22 = arith.constant dense<0.000000e+00> : vector<16x16xf32>
    %63 = tpu.matmul %61, %62, %cst_22 {dimension_numbers = #tpu.dot_dimension_numbers<[1], [0], [0], [1], [0, 0, 1, 1], [], []>} : vector<16x32xf32>, vector<32x16xf32>, vector<16x16xf32> -> vector<16x16xf32>
    %64 = vector.broadcast %59 : vector<1x16xf32> to vector<16x16xf32>
    %65 = arith.addf %63, %64 : vector<16x16xf32>
    %66 = math.tanh %65 : vector<16x16xf32>
    %67 = vector.broadcast %60 : vector<1x16xf32> to vector<16x16xf32>
    %68 = arith.mulf %66, %67 : vector<16x16xf32>
    %cst_23 = arith.constant dense<0.000000e+00> : vector<16xf32>
    %69 = vector.multi_reduction <add>, %68, %cst_23 [1] : vector<16x16xf32> to vector<16xf32>
    %70 = vector.shape_cast %69 : vector<16xf32> to vector<16x1xf32>
    %71 = vector.shape_cast %70 : vector<16x1xf32> to vector<2x8x1xf32>
    %cst_24 = arith.constant dense<0xFF800000> : vector<2x1xf32>
    %72 = vector.multi_reduction <maximumf>, %71, %cst_24 [1] : vector<2x8x1xf32> to vector<2x1xf32>
    %73 = vector.shape_cast %72 : vector<2x1xf32> to vector<2x1x1xf32>
    %74 = vector.broadcast %73 : vector<2x1x1xf32> to vector<2x8x1xf32>
    %75 = arith.subf %71, %74 : vector<2x8x1xf32>
    %76 = math.exp %75 : vector<2x8x1xf32>
    %cst_25 = arith.constant dense<0.000000e+00> : vector<2x1xf32>
    %77 = vector.multi_reduction <add>, %76, %cst_25 [1] : vector<2x8x1xf32> to vector<2x1xf32>
    %78 = vector.shape_cast %77 : vector<2x1xf32> to vector<2x1x1xf32>
    %79 = vector.broadcast %78 : vector<2x1x1xf32> to vector<2x8x1xf32>
    %80 = arith.divf %76, %79 : vector<2x8x1xf32>
    %81 = vector.broadcast %80 : vector<2x8x1xf32> to vector<2x8x32xf32>
    %82 = arith.mulf %81, %58 : vector<2x8x32xf32>
    %cst_26 = arith.constant dense<0.000000e+00> : vector<2x32xf32>
    %83 = vector.multi_reduction <add>, %82, %cst_26 [1] : vector<2x8x32xf32> to vector<2x32xf32>
    %cst_27 = arith.constant 0.000000e+00 : f32
    %84 = vector.broadcast %cst_27 : f32 to vector<2x96xf32>
    %85 = tpu.concatenate %83, %84 in 1 : vector<2x32xf32>, vector<2x96xf32> -> vector<2x128xf32>
    %cst_28 = arith.constant 0.000000e+00 : f32
    %86 = vector.broadcast %cst_28 : f32 to vector<6x128xf32>
    %87 = tpu.concatenate %85, %86 in 0 : vector<2x128xf32>, vector<6x128xf32> -> vector<8x128xf32>
    %c0_29 = arith.constant 0 : index
    %c0_30 = arith.constant 0 : index
    %88 = vector.load %arg5[%c0_29, %c0_30] : memref<8x128xf32, #tpu.memory_space<vmem>>, vector<8x128xf32>
    tpu.vector_store %arg5[%c0_29, %c0_30], %87 {strides = array<i32>} : memref<8x128xf32, #tpu.memory_space<vmem>>, vector<8x128xf32>,
    return
  }
  func.func @transform_0(%arg0: i32) -> (i32, i32, i32) {
    %c0_i32 = arith.constant 0 : i32
    %c0_i32_0 = arith.constant 0 : i32
    %c0_i32_1 = arith.constant 0 : i32
    %c0_i32_2 = arith.constant 0 : i32
    return %c0_i32, %c0_i32_0, %c0_i32_1 : i32, i32, i32
  }
  func.func @transform_1(%arg0: i32) -> (i32, i32) {
    %c0_i32 = arith.constant 0 : i32
    %c0_i32_0 = arith.constant 0 : i32
    %c0_i32_1 = arith.constant 0 : i32
    return %c0_i32, %c0_i32_0 : i32, i32
  }
  func.func @transform_2(%arg0: i32) -> (i32, i32) {
    %c0_i32 = arith.constant 0 : i32
    %c0_i32_0 = arith.constant 0 : i32
    %c0_i32_1 = arith.constant 0 : i32
    return %c0_i32, %c0_i32_0 : i32, i32
  }
  func.func @transform_3(%arg0: i32) -> (i32, i32) {
    %c0_i32 = arith.constant 0 : i32
    %c0_i32_0 = arith.constant 0 : i32
    %c0_i32_1 = arith.constant 0 : i32
    return %c0_i32, %c0_i32_0 : i32, i32
  }
  func.func @transform_4(%arg0: i32) -> (i32, i32) {
    %c0_i32 = arith.constant 0 : i32
    %c0_i32_0 = arith.constant 0 : i32
    %c0_i32_1 = arith.constant 0 : i32
    return %c0_i32, %c0_i32_0 : i32, i32
  }
}

</mosaic_0001>

<llo_original>
// kernel: tpu_custom_call.1
$region0: #{tpu_custom_call.1}
  #allocation0 [shape = 'u32[]', space=smem, size = 0x4, offset = 0x4, fixed_abs, tag = 'smem constant byte address 0x4 - core index']
  #allocation1 [shape = 'u32[72,128]{1,0:T(1,128)}', space=vmem, size = 0x9000, scoped, tag = 'internal scratch']
  %s0 = inlined_call_operand.vmem [shape: f32[2,8,32], index: 0, kind: input, shape index: {}]
  %s1 = inlined_call_operand.vmem [shape: f32[32,96], index: 1, kind: input, shape index: {}]
  %s2 = inlined_call_operand.vmem [shape: f32[32,16], index: 2, kind: input, shape index: {}]
  %s3 = inlined_call_operand.vmem [shape: f32[2,16], index: 3, kind: input, shape index: {}]
  %s4 = inlined_call_operand.hbm [shape: f32[8,128], index: 4, kind: output, shape index: {}]
  %s5 = sld [smem:[#allocation0]]
  $region26: #{tpu_custom_call.1} parent=0
    _
  %s7 = ssub.s32 1, %s5
  %s8 = scalar_select 0, %s7, %s5
  $region1: #{tpu_custom_call.1} parent=0
    #allocation2 [shape = 'u8[4096]{0}', space=vmem, size = 0x1000, scoped, tag = 'output window, operand 0, single buffered']
    #allocation3 [shape = 's32[1]{0}', space=sflag, size = 0x4, scoped, tag = 'scoped memory for tpu_custom_call.1']
    %9 = vsyncpa [#allocation3], 0
    // Predicated region
    $region2: #{tpu_custom_call.1} parent=1 // pred_check
      _
    $region3: #{tpu_custom_call.1} parent=1 // pred_check_branch
      %11 = sbr.rel (0) target = $region5
    $region4: #{tpu_custom_call.1} parent=1 // pred_region
      _
    $region5: #{tpu_custom_call.1} parent=1 // pred_fallthru
      _
    // Predicated region
    $region6: #{tpu_custom_call.1} parent=1 // pred_check
      _
    $region7: #{tpu_custom_call.1} parent=1 // pred_check_branch
      %13 = sbr.rel (0) target = $region9
    $region8: #{tpu_custom_call.1} parent=1 // pred_region
      _
    $region9: #{tpu_custom_call.1} parent=1 // pred_fallthru
      _
    // Predicated region
    $region10: #{tpu_custom_call.1} parent=1 // pred_check
      _
    $region11: #{tpu_custom_call.1} parent=1 // pred_check_branch
      %15 = sbr.rel (0) target = $region13
    $region12: #{tpu_custom_call.1} parent=1 // pred_region
      _
    $region13: #{tpu_custom_call.1} parent=1 // pred_fallthru
      _
    // Predicated region
    $region14: #{tpu_custom_call.1} parent=1 // pred_check
      _
    $region15: #{tpu_custom_call.1} parent=1 // pred_check_branch
      %17 = sbr.rel (0) target = $region17
    $region16: #{tpu_custom_call.1} parent=1 // pred_region
      _
    $region17: #{tpu_custom_call.1} parent=1 // pred_fallthru
      _
    %v18 = vld [vmem:[%s0] sm:$0xff]
    %v19 = vld [vmem:[%s0 + $0x8] sm:$0xff]
    %v20 = vld [vmem:[%s1] sm:$0xff]
    %v21 = vld [vmem:[%s1 + $0x8] sm:$0xff]
    %v22 = vld [vmem:[%s1 + $0x10] sm:$0xff]
    %v23 = vld [vmem:[%s1 + $0x18] sm:$0xff]
    %vm24 = vcmask 261120
    %v26 = vsel %vm24, %v18, 0
    %v29 = vsel %vm24, %v19, 0
    %31 = vmatpush.msra.mxu0 0.0
    %32 = vmatpush.msra.mxu0 0.0
    %33 = vmatpush.msra.mxu0 0.0
    %34 = vmatpush.msra.mxu0 0.0
    %35 = vmatpush.msra.mxu0 0.0
    %36 = vmatpush.msra.mxu0 0.0
    %37 = vmatpush.msra.mxu0 0.0
    %38 = vmatpush.msra.mxu0 0.0
    %39 = vmatpush.msra.mxu0 0.0
    %40 = vmatpush.msra.mxu0 0.0
    %41 = vmatpush.msra.mxu0 0.0
    %42 = vmatpush.msra.mxu0 0.0
    %43 = vmatpush.msra.mxu0 %v23
    %44 = vmatpush.msra.mxu0 %v22
    %45 = vmatpush.msra.mxu0 %v21
    %46 = vmatpush.msra.mxu0 %v20
    %47 = vmatmul.f32.gmra.mxu0 %v26
    %v48 = vpop.f32.mrf.mxu0
    %v49 = vadd.f32 0.0, %v48
    %50 = vmatmul.f32.gmra.mxu0 %v29
    %v51 = vpop.f32.mrf.mxu0
    %v52 = vadd.f32 0.0, %v51
    %53 = vdwg.mxu0
    %v54 = vlaneseq
    %v55 = vshrl.u32 %v54, 7
    %v56 = vadd.s32 %v55, 8
    %v57 = vadd.s32 %v55, 16
    %v58 = vadd.s32 %v55, 24
    %v59 = vlaneseq
    %v60 = vand.u32 %v59, 127
    %v61 = vmul.u32 %v60, 8
    %vm62 = vcmp.ge.s32.totalorder %v55, %v61
    %vm63 = vcmp.ge.s32.totalorder %v56, %v61
    %vm64 = vcmp.ge.s32.totalorder %v57, %v61
    %vm65 = vcmp.ge.s32.totalorder %v58, %v61
    %v66 = vadd.s32 %v60, 1
    %v67 = vmul.u32 %v66, 8
    %vm68 = vcmp.lt.s32.totalorder %v55, %v67
    %vm69 = vcmp.lt.s32.totalorder %v56, %v67
    %vm70 = vcmp.lt.s32.totalorder %v57, %v67
    %vm71 = vcmp.lt.s32.totalorder %v58, %v67
    %vm72 = vmand %vm62, %vm68
    %vm73 = vmand %vm63, %vm69
    %vm74 = vmand %vm64, %vm70
    %vm75 = vmand %vm65, %vm71
    %v76 = vsel %vm72, 1.0, 0.0
    %v77 = vsel %vm73, 1.0, 0.0
    %v78 = vsel %vm74, 1.0, 0.0
    %v79 = vsel %vm75, 1.0, 0.0
    %v80 = vmul.u32 %v55, 8
    %vm81 = vcmp.ge.s32.totalorder %v60, %v80
    %v82 = vadd.s32 %v55, 1
    %v83 = vmul.u32 %v82, 8
    %vm84 = vcmp.lt.s32.totalorder %v60, %v83
    %vm85 = vmand %vm81, %vm84
    %v86 = vsel %vm85, 1.0, 0.0
    %v89 = vrot.slane %v49, 1
    %v90 = vrot.slane %v49, 2
    %v91 = vrot.slane %v49, 3
    %v92 = vrot.slane %v49, 4
    %v93 = vrot.slane %v49, 5
    %v94 = vrot.slane %v49, 6
    %v95 = vrot.slane %v49, 7
    %v96 = vrot.slane %v52, 1
    %v97 = vrot.slane %v52, 2
    %v98 = vrot.slane %v52, 3
    %v99 = vrot.slane %v52, 4
    %v100 = vrot.slane %v52, 5
    %v101 = vrot.slane %v52, 6
    %v102 = vrot.slane %v52, 7
    %v103 = vperm.slane %v49, 0
    %v104 = vperm.slane %v89, 0
    %v105 = vperm.slane %v90, 0
    %v106 = vperm.slane %v91, 0
    %v107 = vperm.slane %v92, 0
    %v108 = vperm.slane %v93, 0
    %v109 = vperm.slane %v94, 0
    %v110 = vperm.slane %v95, 0
    %v111 = vperm.slane %v52, 0
    %v112 = vperm.slane %v96, 0
    %v113 = vperm.slane %v97, 0
    %v114 = vperm.slane %v98, 0
    %v115 = vperm.slane %v99, 0
    %v116 = vperm.slane %v100, 0
    %v117 = vperm.slane %v101, 0
    %v118 = vperm.slane %v102, 0
    %135 = vrot.lane.b32.xlu0 %v49, 96
    %v136 = vpop.permute.xlu0 %135
    %137 = vrot.lane.b32.xlu0 %v52, 96
    %v138 = vpop.permute.xlu0 %137
    %v141 = vmul.f32 %v103, %v136
    %v142 = vmul.f32 %v104, %v136
    %v143 = vmul.f32 %v105, %v136
    %v144 = vmul.f32 %v106, %v136
    %v145 = vmul.f32 %v107, %v136
    %v146 = vmul.f32 %v108, %v136
    %v147 = vmul.f32 %v109, %v136
    %v148 = vmul.f32 %v110, %v136
    %v149 = vmul.f32 %v111, %v138
    %v150 = vmul.f32 %v112, %v138
    %v151 = vmul.f32 %v113, %v138
    %v152 = vmul.f32 %v114, %v138
    %v153 = vmul.f32 %v115, %v138
    %v154 = vmul.f32 %v116, %v138
    %v155 = vmul.f32 %v117, %v138
    %v156 = vmul.f32 %v118, %v138
    %v158 = vsel %vm24, %v141, 0
    %v161 = vsel %vm24, %v142, 0
    %v164 = vsel %vm24, %v143, 0
    %v167 = vsel %vm24, %v144, 0
    %v170 = vsel %vm24, %v145, 0
    %v173 = vsel %vm24, %v146, 0
    %v176 = vsel %vm24, %v147, 0
    %v179 = vsel %vm24, %v148, 0
    %v182 = vsel %vm24, %v149, 0
    %v185 = vsel %vm24, %v150, 0
    %v188 = vsel %vm24, %v151, 0
    %v191 = vsel %vm24, %v152, 0
    %v194 = vsel %vm24, %v153, 0
    %v197 = vsel %vm24, %v154, 0
    %v200 = vsel %vm24, %v155, 0
    %v203 = vsel %vm24, %v156, 0
    %205 = vmatpush.msra.mxu0 0.0
    %206 = vmatpush.msra.mxu0 0.0
    %207 = vmatpush.msra.mxu0 0.0
    %208 = vmatpush.msra.mxu0 0.0
    %209 = vmatpush.msra.mxu0 0.0
    %210 = vmatpush.msra.mxu0 0.0
    %211 = vmatpush.msra.mxu0 0.0
    %212 = vmatpush.msra.mxu0 0.0
    %213 = vmatpush.msra.mxu0 0.0
    %214 = vmatpush.msra.mxu0 0.0
    %215 = vmatpush.msra.mxu0 0.0
    %216 = vmatpush.msra.mxu0 0.0
    %217 = vmatpush.msra.mxu0 %v79
    %218 = vmatpush.msra.mxu0 %v78
    %219 = vmatpush.msra.mxu0 %v77
    %220 = vmatpush.msra.mxu0 %v76
    %221 = vmatmul.f32.gmra.mxu0 %v158
    %v222 = vpop.f32.mrf.mxu0
    %v223 = vadd.f32 0.0, %v222
    %224 = vmatmul.f32.gmra.mxu0 %v161
    %v225 = vpop.f32.mrf.mxu0
    %v226 = vadd.f32 0.0, %v225
    %227 = vmatmul.f32.gmra.mxu0 %v164
    %v228 = vpop.f32.mrf.mxu0
    %v229 = vadd.f32 0.0, %v228
    %230 = vmatmul.f32.gmra.mxu0 %v167
    %v231 = vpop.f32.mrf.mxu0
    %v232 = vadd.f32 0.0, %v231
    %233 = vmatmul.f32.gmra.mxu0 %v170
    %v234 = vpop.f32.mrf.mxu0
    %v235 = vadd.f32 0.0, %v234
    %236 = vmatmul.f32.gmra.mxu0 %v173
    %v237 = vpop.f32.mrf.mxu0
    %v238 = vadd.f32 0.0, %v237
    %239 = vmatmul.f32.gmra.mxu0 %v176
    %v240 = vpop.f32.mrf.mxu0
    %v241 = vadd.f32 0.0, %v240
    %242 = vmatmul.f32.gmra.mxu0 %v179
    %v243 = vpop.f32.mrf.mxu0
    %v244 = vadd.f32 0.0, %v243
    %245 = vmatmul.f32.gmra.mxu0 %v182
    %v246 = vpop.f32.mrf.mxu0
    %v247 = vadd.f32 0.0, %v246
    %248 = vmatmul.f32.gmra.mxu0 %v185
    %v249 = vpop.f32.mrf.mxu0
    %v250 = vadd.f32 0.0, %v249
    %251 = vmatmul.f32.gmra.mxu0 %v188
    %v252 = vpop.f32.mrf.mxu0
    %v253 = vadd.f32 0.0, %v252
    %254 = vmatmul.f32.gmra.mxu0 %v191
    %v255 = vpop.f32.mrf.mxu0
    %v256 = vadd.f32 0.0, %v255
    %257 = vmatmul.f32.gmra.mxu0 %v194
    %v258 = vpop.f32.mrf.mxu0
    %v259 = vadd.f32 0.0, %v258
    %260 = vmatmul.f32.gmra.mxu0 %v197
    %v261 = vpop.f32.mrf.mxu0
    %v262 = vadd.f32 0.0, %v261
    %263 = vmatmul.f32.gmra.mxu0 %v200
    %v264 = vpop.f32.mrf.mxu0
    %v265 = vadd.f32 0.0, %v264
    %266 = vmatmul.f32.gmra.mxu0 %v203
    %v267 = vpop.f32.mrf.mxu0
    %v268 = vadd.f32 0.0, %v267
    %269 = vdwg.mxu0
    %v270 = vmul.f32 %v223, 1.442695
    %v271 = vpow.pop %v270
    %v272 = vmul.f32 %v226, 1.442695
    %v273 = vpow.pop %v272
    %v274 = vmul.f32 %v229, 1.442695
    %v275 = vpow.pop %v274
    %v276 = vmul.f32 %v232, 1.442695
    %v277 = vpow.pop %v276
    %v278 = vmul.f32 %v235, 1.442695
    %v279 = vpow.pop %v278
    %v280 = vmul.f32 %v238, 1.442695
    %v281 = vpow.pop %v280
    %v282 = vmul.f32 %v241, 1.442695
    %v283 = vpow.pop %v282
    %v284 = vmul.f32 %v244, 1.442695
    %v285 = vpow.pop %v284
    %v286 = vmul.f32 %v247, 1.442695
    %v287 = vpow.pop %v286
    %v288 = vmul.f32 %v250, 1.442695
    %v289 = vpow.pop %v288
    %v290 = vmul.f32 %v253, 1.442695
    %v291 = vpow.pop %v290
    %v292 = vmul.f32 %v256, 1.442695
    %v293 = vpow.pop %v292
    %v294 = vmul.f32 %v259, 1.442695
    %v295 = vpow.pop %v294
    %v296 = vmul.f32 %v262, 1.442695
    %v297 = vpow.pop %v296
    %v298 = vmul.f32 %v265, 1.442695
    %v299 = vpow.pop %v298
    %v300 = vmul.f32 %v268, 1.442695
    %v301 = vpow.pop %v300
    %vm302 = vcmask 31744
    %v303 = vsel %vm302, %v271, 0.0
    %v304 = vrot.slane %v303, 4
    %v305 = vadd.f32 %v303, %v304
    %v306 = vrot.slane %v305, 2
    %v307 = vadd.f32 %v305, %v306
    %v308 = vrot.slane %v307, 1
    %v309 = vadd.f32 %v307, %v308
    %v310 = vsel %vm302, %v273, 0.0
    %v311 = vrot.slane %v310, 4
    %v312 = vadd.f32 %v310, %v311
    %v313 = vrot.slane %v312, 2
    %v314 = vadd.f32 %v312, %v313
    %v315 = vrot.slane %v314, 1
    %v316 = vadd.f32 %v314, %v315
    %v317 = vsel %vm302, %v275, 0.0
    %v318 = vrot.slane %v317, 4
    %v319 = vadd.f32 %v317, %v318
    %v320 = vrot.slane %v319, 2
    %v321 = vadd.f32 %v319, %v320
    %v322 = vrot.slane %v321, 1
    %v323 = vadd.f32 %v321, %v322
    %v324 = vsel %vm302, %v277, 0.0
    %v325 = vrot.slane %v324, 4
    %v326 = vadd.f32 %v324, %v325
    %v327 = vrot.slane %v326, 2
    %v328 = vadd.f32 %v326, %v327
    %v329 = vrot.slane %v328, 1
    %v330 = vadd.f32 %v328, %v329
    %v331 = vsel %vm302, %v279, 0.0
    %v332 = vrot.slane %v331, 4
    %v333 = vadd.f32 %v331, %v332
    %v334 = vrot.slane %v333, 2
    %v335 = vadd.f32 %v333, %v334
    %v336 = vrot.slane %v335, 1
    %v337 = vadd.f32 %v335, %v336
    %v338 = vsel %vm302, %v281, 0.0
    %v339 = vrot.slane %v338, 4
    %v340 = vadd.f32 %v338, %v339
    %v341 = vrot.slane %v340, 2
    %v342 = vadd.f32 %v340, %v341
    %v343 = vrot.slane %v342, 1
    %v344 = vadd.f32 %v342, %v343
    %v345 = vsel %vm302, %v283, 0.0
    %v346 = vrot.slane %v345, 4
    %v347 = vadd.f32 %v345, %v346
    %v348 = vrot.slane %v347, 2
    %v349 = vadd.f32 %v347, %v348
    %v350 = vrot.slane %v349, 1
    %v351 = vadd.f32 %v349, %v350
    %v352 = vsel %vm302, %v285, 0.0
    %v353 = vrot.slane %v352, 4
    %v354 = vadd.f32 %v352, %v353
    %v355 = vrot.slane %v354, 2
    %v356 = vadd.f32 %v354, %v355
    %v357 = vrot.slane %v356, 1
    %v358 = vadd.f32 %v356, %v357
    %v359 = vsel %vm302, %v287, 0.0
    %v360 = vrot.slane %v359, 4
    %v361 = vadd.f32 %v359, %v360
    %v362 = vrot.slane %v361, 2
    %v363 = vadd.f32 %v361, %v362
    %v364 = vrot.slane %v363, 1
    %v365 = vadd.f32 %v363, %v364
    %v366 = vsel %vm302, %v289, 0.0
    %v367 = vrot.slane %v366, 4
    %v368 = vadd.f32 %v366, %v367
    %v369 = vrot.slane %v368, 2
    %v370 = vadd.f32 %v368, %v369
    %v371 = vrot.slane %v370, 1
    %v372 = vadd.f32 %v370, %v371
    %v373 = vsel %vm302, %v291, 0.0
    %v374 = vrot.slane %v373, 4
    %v375 = vadd.f32 %v373, %v374
    %v376 = vrot.slane %v375, 2
    %v377 = vadd.f32 %v375, %v376
    %v378 = vrot.slane %v377, 1
    %v379 = vadd.f32 %v377, %v378
    %v380 = vsel %vm302, %v293, 0.0
    %v381 = vrot.slane %v380, 4
    %v382 = vadd.f32 %v380, %v381
    %v383 = vrot.slane %v382, 2
    %v384 = vadd.f32 %v382, %v383
    %v385 = vrot.slane %v384, 1
    %v386 = vadd.f32 %v384, %v385
    %v387 = vsel %vm302, %v295, 0.0
    %v388 = vrot.slane %v387, 4
    %v389 = vadd.f32 %v387, %v388
    %v390 = vrot.slane %v389, 2
    %v391 = vadd.f32 %v389, %v390
    %v392 = vrot.slane %v391, 1
    %v393 = vadd.f32 %v391, %v392
    %v394 = vsel %vm302, %v297, 0.0
    %v395 = vrot.slane %v394, 4
    %v396 = vadd.f32 %v394, %v395
    %v397 = vrot.slane %v396, 2
    %v398 = vadd.f32 %v396, %v397
    %v399 = vrot.slane %v398, 1
    %v400 = vadd.f32 %v398, %v399
    %v401 = vsel %vm302, %v299, 0.0
    %v402 = vrot.slane %v401, 4
    %v403 = vadd.f32 %v401, %v402
    %v404 = vrot.slane %v403, 2
    %v405 = vadd.f32 %v403, %v404
    %v406 = vrot.slane %v405, 1
    %v407 = vadd.f32 %v405, %v406
    %v408 = vsel %vm302, %v301, 0.0
    %v409 = vrot.slane %v408, 4
    %v410 = vadd.f32 %v408, %v409
    %v411 = vrot.slane %v410, 2
    %v412 = vadd.f32 %v410, %v411
    %v413 = vrot.slane %v412, 1
    %v414 = vadd.f32 %v412, %v413
    %v415 = vadd.f32 %v309, 1e-08
    %v416 = vadd.f32 %v316, 1e-08
    %v417 = vadd.f32 %v323, 1e-08
    %v418 = vadd.f32 %v330, 1e-08
    %v419 = vadd.f32 %v337, 1e-08
    %v420 = vadd.f32 %v344, 1e-08
    %v421 = vadd.f32 %v351, 1e-08
    %v422 = vadd.f32 %v358, 1e-08
    %v423 = vadd.f32 %v365, 1e-08
    %v424 = vadd.f32 %v372, 1e-08
    %v425 = vadd.f32 %v379, 1e-08
    %v426 = vadd.f32 %v386, 1e-08
    %v427 = vadd.f32 %v393, 1e-08
    %v428 = vadd.f32 %v400, 1e-08
    %v429 = vadd.f32 %v407, 1e-08
    %v430 = vadd.f32 %v414, 1e-08
    %v431 = vrcp.pop %v415
    %v432 = vrcp.pop %v416
    %v433 = vrcp.pop %v417
    %v434 = vrcp.pop %v418
    %v435 = vrcp.pop %v419
    %v436 = vrcp.pop %v420
    %v437 = vrcp.pop %v421
    %v438 = vrcp.pop %v422
    %v439 = vrcp.pop %v423
    %v440 = vrcp.pop %v424
    %v441 = vrcp.pop %v425
    %v442 = vrcp.pop %v426
    %v443 = vrcp.pop %v427
    %v444 = vrcp.pop %v428
    %v445 = vrcp.pop %v429
    %v446 = vrcp.pop %v430
    %v447 = vmul.f32 %v271, %v431
    %v448 = vmul.f32 %v273, %v432
    %v449 = vmul.f32 %v275, %v433
    %v450 = vmul.f32 %v277, %v434
    %v451 = vmul.f32 %v279, %v435
    %v452 = vmul.f32 %v281, %v436
    %v453 = vmul.f32 %v283, %v437
    %v454 = vmul.f32 %v285, %v438
    %v455 = vmul.f32 %v287, %v439
    %v456 = vmul.f32 %v289, %v440
    %v457 = vmul.f32 %v291, %v441
    %v458 = vmul.f32 %v293, %v442
    %v459 = vmul.f32 %v295, %v443
    %v460 = vmul.f32 %v297, %v444
    %v461 = vmul.f32 %v299, %v445
    %v462 = vmul.f32 %v301, %v446
    %v464 = vsel %vm302, %v447, 0
    %v467 = vsel %vm302, %v448, 0
    %v470 = vsel %vm302, %v449, 0
    %v473 = vsel %vm302, %v450, 0
    %v476 = vsel %vm302, %v451, 0
    %v479 = vsel %vm302, %v452, 0
    %v482 = vsel %vm302, %v453, 0
    %v485 = vsel %vm302, %v454, 0
    %v488 = vsel %vm302, %v455, 0
    %v491 = vsel %vm302, %v456, 0
    %v494 = vsel %vm302, %v457, 0
    %v497 = vsel %vm302, %v458, 0
    %v500 = vsel %vm302, %v459, 0
    %v503 = vsel %vm302, %v460, 0
    %v506 = vsel %vm302, %v461, 0
    %v509 = vsel %vm302, %v462, 0
    %vm511 = vcmask 1043456
    %v513 = vsel %vm511, %v86, 0
    %515 = vmatpush.msra.mxu0 0.0
    %516 = vmatpush.msra.mxu0 0.0
    %517 = vmatpush.msra.mxu0 0.0
    %518 = vmatpush.msra.mxu0 0.0
    %519 = vmatpush.msra.mxu0 0.0
    %520 = vmatpush.msra.mxu0 0.0
    %521 = vmatpush.msra.mxu0 0.0
    %522 = vmatpush.msra.mxu0 0.0
    %523 = vmatpush.msra.mxu0 0.0
    %524 = vmatpush.msra.mxu0 0.0
    %525 = vmatpush.msra.mxu0 0.0
    %526 = vmatpush.msra.mxu0 0.0
    %527 = vmatpush.msra.mxu0 0.0
    %528 = vmatpush.msra.mxu0 0.0
    %529 = vmatpush.msra.mxu0 0.0
    %530 = vmatpush.msra.mxu0 %v513
    %531 = vmatmul.f32.gmra.mxu0 %v464
    %v532 = vpop.f32.mrf.mxu0
    %v533 = vadd.f32 0.0, %v532
    %534 = vmatmul.f32.gmra.mxu0 %v467
    %v535 = vpop.f32.mrf.mxu0
    %v536 = vadd.f32 0.0, %v535
    %537 = vmatmul.f32.gmra.mxu0 %v470
    %v538 = vpop.f32.mrf.mxu0
    %v539 = vadd.f32 0.0, %v538
    %540 = vmatmul.f32.gmra.mxu0 %v473
    %v541 = vpop.f32.mrf.mxu0
    %v542 = vadd.f32 0.0, %v541
    %543 = vmatmul.f32.gmra.mxu0 %v476
    %v544 = vpop.f32.mrf.mxu0
    %v545 = vadd.f32 0.0, %v544
    %546 = vmatmul.f32.gmra.mxu0 %v479
    %v547 = vpop.f32.mrf.mxu0
    %v548 = vadd.f32 0.0, %v547
    %549 = vmatmul.f32.gmra.mxu0 %v482
    %v550 = vpop.f32.mrf.mxu0
    %v551 = vadd.f32 0.0, %v550
    %552 = vmatmul.f32.gmra.mxu0 %v485
    %v553 = vpop.f32.mrf.mxu0
    %v554 = vadd.f32 0.0, %v553
    %555 = vmatmul.f32.gmra.mxu0 %v488
    %v556 = vpop.f32.mrf.mxu0
    %v557 = vadd.f32 0.0, %v556
    %558 = vmatmul.f32.gmra.mxu0 %v491
    %v559 = vpop.f32.mrf.mxu0
    %v560 = vadd.f32 0.0, %v559
    %561 = vmatmul.f32.gmra.mxu0 %v494
    %v562 = vpop.f32.mrf.mxu0
    %v563 = vadd.f32 0.0, %v562
    %564 = vmatmul.f32.gmra.mxu0 %v497
    %v565 = vpop.f32.mrf.mxu0
    %v566 = vadd.f32 0.0, %v565
    %567 = vmatmul.f32.gmra.mxu0 %v500
    %v568 = vpop.f32.mrf.mxu0
    %v569 = vadd.f32 0.0, %v568
    %570 = vmatmul.f32.gmra.mxu0 %v503
    %v571 = vpop.f32.mrf.mxu0
    %v572 = vadd.f32 0.0, %v571
    %573 = vmatmul.f32.gmra.mxu0 %v506
    %v574 = vpop.f32.mrf.mxu0
    %v575 = vadd.f32 0.0, %v574
    %576 = vmatmul.f32.gmra.mxu0 %v509
    %v577 = vpop.f32.mrf.mxu0
    %v578 = vadd.f32 0.0, %v577
    %579 = vdwg.mxu0
    %580 = vrot.lane.b32.xlu0 %v49, 64
    %v581 = vpop.permute.xlu0 %580
    %582 = vrot.lane.b32.xlu0 %v52, 64
    %v583 = vpop.permute.xlu0 %582
    %v586 = vmul.f32 %v533, %v581
    %v587 = vmul.f32 %v536, %v581
    %v588 = vmul.f32 %v539, %v581
    %v589 = vmul.f32 %v542, %v581
    %v590 = vmul.f32 %v545, %v581
    %v591 = vmul.f32 %v548, %v581
    %v592 = vmul.f32 %v551, %v581
    %v593 = vmul.f32 %v554, %v581
    %v594 = vmul.f32 %v557, %v583
    %v595 = vmul.f32 %v560, %v583
    %v596 = vmul.f32 %v563, %v583
    %v597 = vmul.f32 %v566, %v583
    %v598 = vmul.f32 %v569, %v583
    %v599 = vmul.f32 %v572, %v583
    %v600 = vmul.f32 %v575, %v583
    %v601 = vmul.f32 %v578, %v583
    %v602 = vsel %vm24, %v586, 0.0
    %v603 = vrot.slane %v602, 4
    %v604 = vadd.f32 %v602, %v603
    %v605 = vrot.slane %v604, 2
    %v606 = vadd.f32 %v604, %v605
    %v607 = vrot.slane %v606, 1
    %v608 = vadd.f32 %v606, %v607
    %v609 = vsel %vm24, %v587, 0.0
    %v610 = vrot.slane %v609, 4
    %v611 = vadd.f32 %v609, %v610
    %v612 = vrot.slane %v611, 2
    %v613 = vadd.f32 %v611, %v612
    %v614 = vrot.slane %v613, 1
    %v615 = vadd.f32 %v613, %v614
    %v616 = vsel %vm24, %v588, 0.0
    %v617 = vrot.slane %v616, 4
    %v618 = vadd.f32 %v616, %v617
    %v619 = vrot.slane %v618, 2
    %v620 = vadd.f32 %v618, %v619
    %v621 = vrot.slane %v620, 1
    %v622 = vadd.f32 %v620, %v621
    %v623 = vsel %vm24, %v589, 0.0
    %v624 = vrot.slane %v623, 4
    %v625 = vadd.f32 %v623, %v624
    %v626 = vrot.slane %v625, 2
    %v627 = vadd.f32 %v625, %v626
    %v628 = vrot.slane %v627, 1
    %v629 = vadd.f32 %v627, %v628
    %v630 = vsel %vm24, %v590, 0.0
    %v631 = vrot.slane %v630, 4
    %v632 = vadd.f32 %v630, %v631
    %v633 = vrot.slane %v632, 2
    %v634 = vadd.f32 %v632, %v633
    %v635 = vrot.slane %v634, 1
    %v636 = vadd.f32 %v634, %v635
    %v637 = vsel %vm24, %v591, 0.0
    %v638 = vrot.slane %v637, 4
    %v639 = vadd.f32 %v637, %v638
    %v640 = vrot.slane %v639, 2
    %v641 = vadd.f32 %v639, %v640
    %v642 = vrot.slane %v641, 1
    %v643 = vadd.f32 %v641, %v642
    %v644 = vsel %vm24, %v592, 0.0
    %v645 = vrot.slane %v644, 4
    %v646 = vadd.f32 %v644, %v645
    %v647 = vrot.slane %v646, 2
    %v648 = vadd.f32 %v646, %v647
    %v649 = vrot.slane %v648, 1
    %v650 = vadd.f32 %v648, %v649
    %v651 = vsel %vm24, %v593, 0.0
    %v652 = vrot.slane %v651, 4
    %v653 = vadd.f32 %v651, %v652
    %v654 = vrot.slane %v653, 2
    %v655 = vadd.f32 %v653, %v654
    %v656 = vrot.slane %v655, 1
    %v657 = vadd.f32 %v655, %v656
    %v658 = vsel %vm24, %v594, 0.0
    %v659 = vrot.slane %v658, 4
    %v660 = vadd.f32 %v658, %v659
    %v661 = vrot.slane %v660, 2
    %v662 = vadd.f32 %v660, %v661
    %v663 = vrot.slane %v662, 1
    %v664 = vadd.f32 %v662, %v663
    %v665 = vsel %vm24, %v595, 0.0
    %v666 = vrot.slane %v665, 4
    %v667 = vadd.f32 %v665, %v666
    %v668 = vrot.slane %v667, 2
    %v669 = vadd.f32 %v667, %v668
    %v670 = vrot.slane %v669, 1
    %v671 = vadd.f32 %v669, %v670
    %v672 = vsel %vm24, %v596, 0.0
    %v673 = vrot.slane %v672, 4
    %v674 = vadd.f32 %v672, %v673
    %v675 = vrot.slane %v674, 2
    %v676 = vadd.f32 %v674, %v675
    %v677 = vrot.slane %v676, 1
    %v678 = vadd.f32 %v676, %v677
    %v679 = vsel %vm24, %v597, 0.0
    %v680 = vrot.slane %v679, 4
    %v681 = vadd.f32 %v679, %v680
    %v682 = vrot.slane %v681, 2
    %v683 = vadd.f32 %v681, %v682
    %v684 = vrot.slane %v683, 1
    %v685 = vadd.f32 %v683, %v684
    %v686 = vsel %vm24, %v598, 0.0
    %v687 = vrot.slane %v686, 4
    %v688 = vadd.f32 %v686, %v687
    %v689 = vrot.slane %v688, 2
    %v690 = vadd.f32 %v688, %v689
    %v691 = vrot.slane %v690, 1
    %v692 = vadd.f32 %v690, %v691
    %v693 = vsel %vm24, %v599, 0.0
    %v694 = vrot.slane %v693, 4
    %v695 = vadd.f32 %v693, %v694
    %v696 = vrot.slane %v695, 2
    %v697 = vadd.f32 %v695, %v696
    %v698 = vrot.slane %v697, 1
    %v699 = vadd.f32 %v697, %v698
    %v700 = vsel %vm24, %v600, 0.0
    %v701 = vrot.slane %v700, 4
    %v702 = vadd.f32 %v700, %v701
    %v703 = vrot.slane %v702, 2
    %v704 = vadd.f32 %v702, %v703
    %v705 = vrot.slane %v704, 1
    %v706 = vadd.f32 %v704, %v705
    %v707 = vsel %vm24, %v601, 0.0
    %v708 = vrot.slane %v707, 4
    %v709 = vadd.f32 %v707, %v708
    %v710 = vrot.slane %v709, 2
    %v711 = vadd.f32 %v709, %v710
    %v712 = vrot.slane %v711, 1
    %v713 = vadd.f32 %v711, %v712
    %v714 = vld [vmem:[%s3] sm:$0x1]
    %v715 = vld [vmem:[%s3 + $0x1] sm:$0x1]
    %v716 = vld [vmem:[%s2] sm:$0xff]
    %v717 = vld [vmem:[%s2 + $0x8] sm:$0xff]
    %v718 = vld [vmem:[%s2 + $0x10] sm:$0xff]
    %v719 = vld [vmem:[%s2 + $0x18] sm:$0xff]
    %v720 = vperm.slane %v714, 0
    %vm737 = vcmask 1041409
    %v738 = vsel %vm737, %v615, %v608
    %vm739 = vcmask 1042434
    %v740 = vsel %vm739, %v622, %v738
    %vm741 = vcmask 1043459
    %v742 = vsel %vm741, %v629, %v740
    %vm743 = vcmask 1044484
    %v744 = vsel %vm743, %v636, %v742
    %vm745 = vcmask 1045509
    %v746 = vsel %vm745, %v643, %v744
    %vm747 = vcmask 1046534
    %v748 = vsel %vm747, %v650, %v746
    %vm749 = vcmask 1047559
    %v750 = vsel %vm749, %v657, %v748
    %v751 = vsel %vm737, %v671, %v664
    %v752 = vsel %vm739, %v678, %v751
    %v753 = vsel %vm741, %v685, %v752
    %v754 = vsel %vm743, %v692, %v753
    %v755 = vsel %vm745, %v699, %v754
    %v756 = vsel %vm747, %v706, %v755
    %v757 = vsel %vm749, %v713, %v756
    %v758 = vsel %vm24, %v750, 0
    %v760 = vsel %vm24, %v757, 0
    %762 = vmatpush.msra.mxu0 0.0
    %763 = vmatpush.msra.mxu0 0.0
    %764 = vmatpush.msra.mxu0 0.0
    %765 = vmatpush.msra.mxu0 0.0
    %766 = vmatpush.msra.mxu0 0.0
    %767 = vmatpush.msra.mxu0 0.0
    %768 = vmatpush.msra.mxu0 0.0
    %769 = vmatpush.msra.mxu0 0.0
    %770 = vmatpush.msra.mxu0 0.0
    %771 = vmatpush.msra.mxu0 0.0
    %772 = vmatpush.msra.mxu0 0.0
    %773 = vmatpush.msra.mxu0 0.0
    %774 = vmatpush.msra.mxu0 %v719
    %775 = vmatpush.msra.mxu0 %v718
    %776 = vmatpush.msra.mxu0 %v717
    %777 = vmatpush.msra.mxu0 %v716
    %778 = vmatmul.f32.gmra.mxu0 %v758
    %v779 = vpop.f32.mrf.mxu0
    %v780 = vadd.f32 %v720, %v779
    %781 = vmatmul.f32.gmra.mxu0 %v760
    %v782 = vpop.f32.mrf.mxu0
    %v783 = vadd.f32 %v720, %v782
    %784 = vdwg.mxu0
    %v785 = vtanh.pop %v780
    %v786 = vtanh.pop %v783
    %v787 = vperm.slane %v715, 0
    %v788 = vmul.f32 %v785, %v787
    %v789 = vmul.f32 %v786, %v787
    %vm790 = vcmask 130048
    %v791 = vsel %vm790, %v788, 0.0
    %792 = vadd.xlane.f32.xlu0 %v791
    %v793 = vpop.xlane.xlu0 %792
    %v794 = vsel %vm790, %v789, 0.0
    %795 = vadd.xlane.f32.xlu0 %v794
    %v796 = vpop.xlane.xlu0 %795
    %v797 = vrot.slane %v793, 4
    %v798 = vmax.f32 %v793, %v797
    %v799 = vrot.slane %v798, 2
    %v800 = vmax.f32 %v798, %v799
    %v801 = vrot.slane %v800, 1
    %v802 = vmax.f32 %v800, %v801
    %v803 = vrot.slane %v796, 4
    %v804 = vmax.f32 %v796, %v803
    %v805 = vrot.slane %v804, 2
    %v806 = vmax.f32 %v804, %v805
    %v807 = vrot.slane %v806, 1
    %v808 = vmax.f32 %v806, %v807
    %v809 = vsub.f32 %v793, %v802
    %v810 = vsub.f32 %v796, %v808
    %v811 = vmul.f32 %v809, 1.442695
    %v812 = vpow.pop %v811
    %v813 = vmul.f32 %v810, 1.442695
    %v814 = vpow.pop %v813
    %v815 = vrot.slane %v812, 4
    %v816 = vadd.f32 %v812, %v815
    %v817 = vrot.slane %v816, 2
    %v818 = vadd.f32 %v816, %v817
    %v819 = vrot.slane %v818, 1
    %v820 = vadd.f32 %v818, %v819
    %v821 = vrot.slane %v814, 4
    %v822 = vadd.f32 %v814, %v821
    %v823 = vrot.slane %v822, 2
    %v824 = vadd.f32 %v822, %v823
    %v825 = vrot.slane %v824, 1
    %v826 = vadd.f32 %v824, %v825
    %v827 = vrcp.pop %v820
    %v828 = vmul.f32 %v820, %v827
    %v829 = vsub.f32 1.0, %v828
    %v830 = vmul.f32 %v827, %v829
    %v831 = vadd.f32 %v827, %v830
    %vm832 = vweird.f32 %v820
    %vm833 = vweird.f32 %v827
    %vm834 = vmor %vm832, %vm833
    %v835 = vsel %vm834, %v827, %v831
    %v836 = vand.u32 2147483647, %v820
    %vm837 = vcmp.eq.f32.partialorder %v836, 8.507059e+37
    %v838 = vand.u32 %v820, 2147483648
    %v839 = vor.u32 1.1754944e-38, %v838
    %v840 = vsel %vm837, %v839, %v835
    %v841 = vmul.f32 %v812, %v840
    %v842 = vrcp.pop %v826
    %v843 = vmul.f32 %v826, %v842
    %v844 = vsub.f32 1.0, %v843
    %v845 = vmul.f32 %v842, %v844
    %v846 = vadd.f32 %v842, %v845
    %vm847 = vweird.f32 %v826
    %vm848 = vweird.f32 %v842
    %vm849 = vmor %vm847, %vm848
    %v850 = vsel %vm849, %v842, %v846
    %v851 = vand.u32 2147483647, %v826
    %vm852 = vcmp.eq.f32.partialorder %v851, 8.507059e+37
    %v853 = vand.u32 %v826, 2147483648
    %v854 = vor.u32 1.1754944e-38, %v853
    %v855 = vsel %vm852, %v854, %v850
    %v856 = vmul.f32 %v814, %v855
    %v859 = vmul.f32 %v841, %v750
    %v860 = vmul.f32 %v856, %v757
    %v861 = vsel %vm24, %v859, 0.0
    %v862 = vrot.slane %v861, 4
    %v863 = vadd.f32 %v861, %v862
    %v864 = vrot.slane %v863, 2
    %v865 = vadd.f32 %v863, %v864
    %v866 = vrot.slane %v865, 1
    %v867 = vadd.f32 %v865, %v866
    %v868 = vsel %vm24, %v860, 0.0
    %v869 = vrot.slane %v868, 4
    %v870 = vadd.f32 %v868, %v869
    %v871 = vrot.slane %v870, 2
    %v872 = vadd.f32 %v870, %v871
    %v873 = vrot.slane %v872, 1
    %v874 = vadd.f32 %v872, %v873
    %v877 = vsel %vm737, %v874, %v867
    %v879 = vsel %vm24, %v877, 0.0
    %vm880 = vcmask 1041408
    %v881 = vsel %vm880, %v879, 0.0
    %882 = vst [vmem:[#allocation2] sm:$0xff] %v881
    // Predicated region
    $region18: #{tpu_custom_call.1} parent=1 // pred_check
      _
    $region19: #{tpu_custom_call.1} parent=1 // pred_check_branch
      %884 = sbr.rel (0) target = $region21
    $region20: #{tpu_custom_call.1} parent=1 // pred_region
      %886 = vsyncadd [#allocation3], 0
      %s888 = sshll.u32 [#allocation2], 4
      %s889 = int_to_ptr.vmem [resolvable:$true] %s888
      %s890 = sshll.u32 %s4, 4
      %s891 = int_to_ptr.hbm [resolvable:$true] %s890
      %893 = dma.vmem_to_hbm [thread:$0]  %s889, 128, %s891, [#allocation3]
    $region21: #{tpu_custom_call.1} parent=1 // pred_fallthru
      _
    // Predicated region
    $region22: #{tpu_custom_call.1} parent=1 // pred_check
      _
    $region23: #{tpu_custom_call.1} parent=1 // pred_check_branch
      %895 = sbr.rel (0) target = $region25
    $region24: #{tpu_custom_call.1} parent=1 // pred_region
      %897 = dma.done [#allocation3], 128
    $region25: #{tpu_custom_call.1} parent=1 // pred_fallthru
      _
    %898 = vsyncpa [#allocation3], 1

</llo_original>
